<compile_context>
chip_gen: v7x
topology: tpu7x:2x2x1
jax: 0.10.0
libtpu: 0.0.40
codegen_flags: <defaults>
</compile_context>

<pallas_src>
import jax
import jax.numpy as jnp
from jax.experimental import pallas as pl
from jax.experimental.pallas import tpu as pltpu

SMOOTH = 0.0  # matches DiceLoss.__init__ (self.smooth = 0.0)
_TARGET_TILE_BYTES = 4 * 1024 * 1024  # per input, per pipeline buffer


def _sublane_multiple(itemsize):
    # f32 -> 8, bf16 -> 16, int8/fp8 -> 32 (sub-32-bit dtypes pack on sublanes)
    return max(8, 32 // int(itemsize))


def _make_kernel(n_rows, tile_rows, needs_mask):
    def kernel(p_ref, t_ref, out_ref, acc_ref):
        # p_ref, t_ref : (1, 1, tile_rows, L) channel-0 tile (VMEM)
        # out_ref      : (1, 2, L) per-batch [intersection, denom] lane partials
        # acc_ref      : (2, L) f32 running lane partials (VMEM scratch)
        h = pl.program_id(1)

        @pl.when(h == 0)
        def _():
            acc_ref[...] = jnp.zeros_like(acc_ref)

        p = p_ref[0, 0].astype(jnp.float32)  # (tile_rows, L)
        t = t_ref[0, 0].astype(jnp.float32)

        if needs_mask:
            # Last tile hangs past the end of the plane: zero the padded rows.
            row = jax.lax.broadcasted_iota(jnp.int32, p.shape, 0) + h * tile_rows
            valid = row < n_rows
            p = jnp.where(valid, p, 0.0)
            t = jnp.where(valid, t, 0.0)

        # Sublane-only partial reduce per tile (intersection and combined
        # denominator sum(p) + sum(t) == sum(p + t)); the cross-lane reduce is
        # deferred to the tiny wrapper-side finish.
        acc_ref[0:1, :] = acc_ref[0:1, :] + jnp.sum(p * t, axis=0, keepdims=True)
        acc_ref[1:2, :] = acc_ref[1:2, :] + jnp.sum(p + t, axis=0, keepdims=True)

        @pl.when(h == pl.num_programs(1) - 1)
        def _():
            out_ref[0] = acc_ref[...]

    return kernel


def dice_loss(y_pred, y_true):
    """Pallas implementation of DiceLoss.forward(y_pred, y_true).

    y_pred, y_true: NCHW arrays (any C >= 1); only channel 0 is read (fused
    into the BlockSpec), exactly like `y_pred[:, 0].contiguous().view(-1)` in
    the PyTorch reference.  Returns a float32 scalar.
    """
    assert y_pred.shape == y_true.shape
    assert y_pred.ndim == 4, "expected NCHW input"
    N, C, H, W = y_pred.shape
    P = H * W

    isize_p = jnp.dtype(y_pred.dtype).itemsize
    isize_t = jnp.dtype(y_true.dtype).itemsize
    max_isize = max(isize_p, isize_t)

    # Lane-dense layout: fold the channel plane into (n_rows, lane) with
    # lane % 128 == 0 when possible (metadata-only reshape of contiguous dims).
    lane = None
    for cand in (1024, 512, 256, 128):
        if P % cand == 0:
            lane = cand
            break
    if lane is not None:
        n_rows = P // lane
        y_pred_l = y_pred.reshape(N, C, n_rows, lane)
        y_true_l = y_true.reshape(N, C, n_rows, lane)
    else:
        # Fallback: keep W (full last dim) — still correct, just not lane-dense.
        lane, n_rows = W, H
        y_pred_l, y_true_l = y_pred, y_true

    # Row tile: dtype-aware sublane multiple, ~4 MiB / input / buffer.
    sub = max(_sublane_multiple(isize_p), _sublane_multiple(isize_t))
    rows_fit = max(1, _TARGET_TILE_BYTES // (lane * max_isize))
    if rows_fit >= n_rows:
        tile_rows = n_rows
    else:
        tile_rows = max(sub, (rows_fit // sub) * sub)
    tile_rows = min(tile_rows, n_rows)
    grid_rows = pl.cdiv(n_rows, tile_rows)
    needs_mask = (n_rows % tile_rows) != 0

    # Channel dim pinned to block 0 -> only channel-0 slabs are DMA'd.
    in_spec = pl.BlockSpec((1, 1, tile_rows, lane), lambda b, h: (b, 0, h, 0))
    out_spec = pl.BlockSpec((1, 2, lane), lambda b, h: (b, 0, 0))

    # Explicit VMEM budget: 2 inputs x 2 pipeline buffers x tile + partials,
    # with headroom; capped below v7x's 64 MiB physical VMEM.
    tile_bytes = tile_rows * lane * (isize_p + isize_t)
    needed = 2 * tile_bytes + 4 * lane * 4 + (1 << 20)
    vmem_limit = int(min(max(2 * needed, 32 << 20), 56 << 20))

    partials = pl.pallas_call(
        _make_kernel(n_rows, tile_rows, needs_mask),
        out_shape=jax.ShapeDtypeStruct((N, 2, lane), jnp.float32),
        grid_spec=pltpu.PrefetchScalarGridSpec(
            num_scalar_prefetch=0,
            grid=(N, grid_rows),
            in_specs=[in_spec, in_spec],
            out_specs=out_spec,
            scratch_shapes=[pltpu.VMEM((2, lane), jnp.float32)],
        ),
        compiler_params=pltpu.CompilerParams(
            # Batch axis produces independent per-batch partials -> can be
            # sharded across TensorCores (v7x megacore); the row axis
            # accumulates into scratch -> sequential.
            dimension_semantics=("parallel", "arbitrary"),
            vmem_limit_bytes=vmem_limit,
        ),
    )(y_pred_l, y_true_l)

    # Tiny finish: one cross-lane/cross-batch reduce + divide (N * 2 * lane f32).
    inter = jnp.sum(partials[:, 0, :])
    denom = jnp.sum(partials[:, 1, :])
    # NOTE: smooth == 0.0 (as in the PyTorch reference) -> all-zero channel-0
    # inputs divide by zero (NaN/Inf); this intentionally matches the reference.
    dsc = (2.0 * inter + SMOOTH) / (denom + SMOOTH)
    return 1.0 - dsc


def dice_loss_ref(y_pred, y_true):
    """Pure-JAX reference mirroring the PyTorch forward."""
    p = y_pred[:, 0].reshape(-1).astype(jnp.float32)
    t = y_true[:, 0].reshape(-1).astype(jnp.float32)
    inter = jnp.sum(p * t)
    dsc = (2.0 * inter + SMOOTH) / (jnp.sum(p) + jnp.sum(t) + SMOOTH)
    return 1.0 - dsc


if __name__ == "__main__":
    key = jax.random.PRNGKey(0)
    k1, k2 = jax.random.split(key)

    # Small NCHW shapes consistent with a segmentation loss: batch=2, C=4, 16x16.
    shape = (2, 4, 16, 16)
    # Sigmoid-like predictions and binary targets (positive values so the
    # smooth=0.0 denominator is non-zero, as in real usage).
    y_pred = jax.nn.sigmoid(jax.random.normal(k1, shape, dtype=jnp.float32))
    y_true = (jax.random.uniform(k2, shape, dtype=jnp.float32) > 0.5).astype(
        jnp.float32
    )

    loss = jax.block_until_ready(dice_loss(y_pred, y_true))
    ref = jax.block_until_ready(dice_loss_ref(y_pred, y_true))

    # Tiled accumulation order may differ slightly from the monolithic sum.
    assert jnp.allclose(loss, ref, rtol=1e-5, atol=1e-5), (loss, ref)
    print("KERNEL_OK")
</pallas_src>

<mosaic_0001>
module attributes {stable_mosaic.version = 11 : i64} {
  func.func @kernel(%arg0: i32, %arg1: i32, %arg2: memref<1x1x1x256xf32, #tpu.memory_space<vmem>>, %arg3: memref<1x1x1x256xf32, #tpu.memory_space<vmem>>, %arg4: memref<1x2x256xf32, #tpu.memory_space<vmem>>, %arg5: memref<2x256xf32, #tpu.memory_space<vmem>>) attributes {dimension_semantics = [#tpu.dimension_semantics<parallel>, #tpu.dimension_semantics<arbitrary>], iteration_bounds = array<i64: 2, 1>, scalar_prefetch = 0 : i64, scratch_operands = 1 : i64, tpu.core_type = #tpu.core_type<tc>, window_params = [{transform_indices = @transform_0, window_bounds = array<i64: 1, 1, 1, 256>}, {transform_indices = @transform_1, window_bounds = array<i64: 1, 1, 1, 256>}, {transform_indices = @transform_2, window_bounds = array<i64: 1, 2, 256>}]} {
    %c0_i32 = arith.constant 0 : i32
    %0 = arith.cmpi eq, %arg1, %c0_i32 : i32
    %1 = arith.extui %0 : i1 to i32
    %c0_i32_0 = arith.constant 0 : i32
    %2 = arith.cmpi ne, %1, %c0_i32_0 : i32
    scf.if %2 {
      %cst_18 = arith.constant 0.000000e+00 : f32
      %22 = vector.broadcast %cst_18 : f32 to vector<2x256xf32>
      %c0_19 = arith.constant 0 : index
      %c0_20 = arith.constant 0 : index
      %23 = vector.load %arg5[%c0_19, %c0_20] : memref<2x256xf32, #tpu.memory_space<vmem>>, vector<2x256xf32>
      tpu.vector_store %arg5[%c0_19, %c0_20], %22 {strides = array<i32>} : memref<2x256xf32, #tpu.memory_space<vmem>>, vector<2x256xf32>,
    } else {
    }
    %c0 = arith.constant 0 : index
    %c0_1 = arith.constant 0 : index
    %c0_2 = arith.constant 0 : index
    %c0_3 = arith.constant 0 : index
    %3 = vector.load %arg2[%c0, %c0_1, %c0_2, %c0_3] : memref<1x1x1x256xf32, #tpu.memory_space<vmem>>, vector<1x1x1x256xf32>
    %4 = vector.shape_cast %3 : vector<1x1x1x256xf32> to vector<1x256xf32>
    %c0_4 = arith.constant 0 : index
    %c0_5 = arith.constant 0 : index
    %c0_6 = arith.constant 0 : index
    %c0_7 = arith.constant 0 : index
    %5 = vector.load %arg3[%c0_4, %c0_5, %c0_6, %c0_7] : memref<1x1x1x256xf32, #tpu.memory_space<vmem>>, vector<1x1x1x256xf32>
    %6 = vector.shape_cast %5 : vector<1x1x1x256xf32> to vector<1x256xf32>
    %c0_8 = arith.constant 0 : index
    %c0_9 = arith.constant 0 : index
    %7 = vector.load %arg5[%c0_8, %c0_9] : memref<2x256xf32, #tpu.memory_space<vmem>>, vector<1x256xf32>
    %8 = arith.mulf %4, %6 : vector<1x256xf32>
    %cst = arith.constant dense<0.000000e+00> : vector<256xf32>
    %9 = vector.multi_reduction <add>, %8, %cst [0] : vector<1x256xf32> to vector<256xf32>
    %10 = vector.shape_cast %9 : vector<256xf32> to vector<1x256xf32>
    %11 = arith.addf %7, %10 : vector<1x256xf32>
    %c0_10 = arith.constant 0 : index
    %c0_11 = arith.constant 0 : index
    %12 = vector.load %arg5[%c0_10, %c0_11] : memref<2x256xf32, #tpu.memory_space<vmem>>, vector<1x256xf32>
    tpu.vector_store %arg5[%c0_10, %c0_11], %11 {strides = array<i32>} : memref<2x256xf32, #tpu.memory_space<vmem>>, vector<1x256xf32>,
    %c1 = arith.constant 1 : index
    %c0_12 = arith.constant 0 : index
    %13 = vector.load %arg5[%c1, %c0_12] : memref<2x256xf32, #tpu.memory_space<vmem>>, vector<1x256xf32>
    %14 = arith.addf %4, %6 : vector<1x256xf32>
    %cst_13 = arith.constant dense<0.000000e+00> : vector<256xf32>
    %15 = vector.multi_reduction <add>, %14, %cst_13 [0] : vector<1x256xf32> to vector<256xf32>
    %16 = vector.shape_cast %15 : vector<256xf32> to vector<1x256xf32>
    %17 = arith.addf %13, %16 : vector<1x256xf32>
    %c1_14 = arith.constant 1 : index
    %c0_15 = arith.constant 0 : index
    %18 = vector.load %arg5[%c1_14, %c0_15] : memref<2x256xf32, #tpu.memory_space<vmem>>, vector<1x256xf32>
    tpu.vector_store %arg5[%c1_14, %c0_15], %17 {strides = array<i32>} : memref<2x256xf32, #tpu.memory_space<vmem>>, vector<1x256xf32>,
    %c0_i32_16 = arith.constant 0 : i32
    %19 = arith.cmpi eq, %arg1, %c0_i32_16 : i32
    %20 = arith.extui %19 : i1 to i32
    %c0_i32_17 = arith.constant 0 : i32
    %21 = arith.cmpi ne, %20, %c0_i32_17 : i32
    scf.if %21 {
      %c0_18 = arith.constant 0 : index
      %c0_19 = arith.constant 0 : index
      %22 = vector.load %arg5[%c0_18, %c0_19] : memref<2x256xf32, #tpu.memory_space<vmem>>, vector<2x256xf32>
      %c0_20 = arith.constant 0 : index
      %c0_21 = arith.constant 0 : index
      %c0_22 = arith.constant 0 : index
      %23 = vector.load %arg4[%c0_20, %c0_21, %c0_22] : memref<1x2x256xf32, #tpu.memory_space<vmem>>, vector<1x2x256xf32>
      %24 = vector.shape_cast %23 : vector<1x2x256xf32> to vector<2x256xf32>
      %25 = vector.shape_cast %22 : vector<2x256xf32> to vector<1x2x256xf32>
      tpu.vector_store %arg4[%c0_20, %c0_21, %c0_22], %25 {strides = array<i32>} : memref<1x2x256xf32, #tpu.memory_space<vmem>>, vector<1x2x256xf32>,
    } else {
    }
    return
  }
  func.func @transform_0(%arg0: i32, %arg1: i32) -> (i32, i32, i32, i32) {
    %c0_i32 = arith.constant 0 : i32
    %c0_i32_0 = arith.constant 0 : i32
    %c0_i32_1 = arith.constant 0 : i32
    return %arg0, %c0_i32, %arg1, %c0_i32_0 : i32, i32, i32, i32
  }
  func.func @transform_1(%arg0: i32, %arg1: i32) -> (i32, i32, i32, i32) {
    %c0_i32 = arith.constant 0 : i32
    %c0_i32_0 = arith.constant 0 : i32
    %c0_i32_1 = arith.constant 0 : i32
    return %arg0, %c0_i32, %arg1, %c0_i32_0 : i32, i32, i32, i32
  }
  func.func @transform_2(%arg0: i32, %arg1: i32) -> (i32, i32, i32) {
    %c0_i32 = arith.constant 0 : i32
    %c0_i32_0 = arith.constant 0 : i32
    %c0_i32_1 = arith.constant 0 : i32
    return %arg0, %c0_i32, %c0_i32_0 : i32, i32, i32
  }
}

</mosaic_0001>

<llo_original>
// kernel: tpu_custom_call.1
$region0: #{tpu_custom_call.1}
  #allocation0 [shape = 'u32[]', space=smem, size = 0x4, offset = 0x4, fixed_abs, tag = 'smem constant byte address 0x4 - core index']
  #allocation1 [shape = 'u32[144,128]{1,0:T(1,128)}', space=vmem, size = 0x12000, scoped, tag = 'internal scratch']
  #allocation2 [shape = 'f32[2,256]{1,0:T(2,128)}', space=vmem, size = 0x800, scoped, tag = 'scratch operand']
  %s0 = inlined_call_operand.hbm [shape: f32[2,4,1,256], index: 0, kind: input, shape index: {}]
  %s1 = inlined_call_operand.hbm [shape: f32[2,4,1,256], index: 1, kind: input, shape index: {}]
  %s2 = inlined_call_operand.hbm [shape: f32[2,2,256], index: 2, kind: output, shape index: {}]
  %s3 = sld [smem:[#allocation0]]
  $region57: #{tpu_custom_call.1} parent=0
    _
  %s5 = ssub.s32 1, %s3
  %s6 = scalar_select 0, %s5, %s3
  $region1: #{tpu_custom_call.1} parent=0
    #allocation3 [shape = 'u8[2048]{0}', space=vmem, size = 0x800, scoped, tag = 'input window, operand 0']
    #allocation4 [shape = 's32[2]{0}', space=sflag, size = 0x8, scoped, tag = 'scoped memory for tpu_custom_call.1']
    #allocation5 [shape = 's32[2]{0}', space=sflag, size = 0x8, scoped, tag = 'scoped memory for tpu_custom_call.1']
    #allocation6 [shape = 'u8[2048]{0}', space=vmem, size = 0x800, scoped, tag = 'input window, operand 1']
    #allocation7 [shape = 's32[2]{0}', space=sflag, size = 0x8, scoped, tag = 'scoped memory for tpu_custom_call.1']
    #allocation8 [shape = 'u8[4096]{0}', space=vmem, size = 0x1000, scoped, tag = 'output window, operand 0']
    %7 = vsyncpa [#allocation4], 0
    %s8 = scalar_lea.sflag [#allocation4], 1
    %9 = vsyncpa %s8, 0
    %10 = vsyncpa [#allocation7], 0
    %s11 = scalar_lea.sflag [#allocation7], 1
    %12 = vsyncpa %s11, 0
    %13 = vsyncpa [#allocation5], 0
    %s14 = scalar_lea.sflag [#allocation5], 1
    %15 = vsyncpa %s14, 0
    loop: start=0, step=1, limit=4
    $region2: #{tpu_custom_call.1} parent=1 // loop_pre_header
      _
    $region3: #{tpu_custom_call.1} parent=1 // loop_header
      %s17 = sphi 0, %s21
      %p18 = scmp.ge.s32.totalorder %s17, 4
      %s24 = sphi 0, %s36
      %s25 = sphi 0, %s32
      %s26 = sphi 0, %s24
      %s27 = sphi 0, %s25
      %s28 = sphi 0, %s26
      %s29 = sphi 0, %s27
      %s41 = sphi 0, %s43
      %s44 = sphi 0, %s41
      %s45 = sphi 0, %s44
      %s61 = sphi 0, %s45
      %s69 = sphi 0, %s71
      %s72 = sphi 0, %s69
      %s73 = sphi 0, %s72
      %s89 = sphi 0, %s73
      %s95 = sphi 0, %s97
      %s98 = sphi 0, %s95
      %s99 = sphi 0, %s98
      %s115 = sphi 0, %s99
    $region4: #{tpu_custom_call.1} parent=1 // loop_header_branch
      %20 = sbr.rel (%p18) target = $region8
    $region5: #{tpu_custom_call.1} parent=1 // loop_body
      %s22 = ssub.s32 %s17, 1
      %s23 = ssub.s32 %s17, 2
      %s30 = sadd.s32 1, %s25
      %p31 = scmp.ge.s32.totalorder %s30, 1
      %s32 = scalar_select %p31, 0, %s30
      %s33 = sadd.s32 1, %s24
      %s34 = scalar_select %p31, %s33, %s24
      %p35 = scmp.ge.s32.totalorder %s34, 2
      %s36 = scalar_select %p35, 0, %s34
      %s37 = ssub.s32 %s24, %s36
      %s38 = ssub.s32 %s25, %s32
      %s39 = sor.u32 %s37, %s38
      %p40 = scmp.eq.s32.totalorder %s39, 0
      %s42 = sadd.s32 %s41, 1
      %s43 = scalar_select %p40, %s41, %s42
      %p46 = pneg %p40
      %p47 = scmp.eq.s32.totalorder %s17, 1
      %p48 = por %p46, %p47
      %p49 = scmp.ne.s32.totalorder %s41, %s44
      %p50 = scmp.eq.s32.totalorder %s17, 0
      %p51 = por %p49, %p50
      %p52 = scmp.ne.s32.totalorder %s41, %s44
      %p53 = scmp.eq.s32.totalorder %s22, 1
      %p54 = por %p52, %p53
      %p55 = scmp.ne.s32.totalorder %s44, %s45
      %p56 = scmp.eq.s32.totalorder %s22, 0
      %p57 = por %p55, %p56
      %p58 = scmp.ne.s32.totalorder %s44, %s45
      %p59 = scmp.eq.s32.totalorder %s23, 1
      %p60 = por %p58, %p59
      %p62 = scmp.ne.s32.totalorder %s45, %s61
      %p63 = scmp.eq.s32.totalorder %s23, 0
      %p64 = por %p62, %p63
      %s65 = ssub.s32 %s24, %s36
      %s66 = ssub.s32 %s25, %s32
      %s67 = sor.u32 %s65, %s66
      %p68 = scmp.eq.s32.totalorder %s67, 0
      %s70 = sadd.s32 %s69, 1
      %s71 = scalar_select %p68, %s69, %s70
      %p74 = pneg %p68
      %p75 = scmp.eq.s32.totalorder %s17, 1
      %p76 = por %p74, %p75
      %p77 = scmp.ne.s32.totalorder %s69, %s72
      %p78 = scmp.eq.s32.totalorder %s17, 0
      %p79 = por %p77, %p78
      %p80 = scmp.ne.s32.totalorder %s69, %s72
      %p81 = scmp.eq.s32.totalorder %s22, 1
      %p82 = por %p80, %p81
      %p83 = scmp.ne.s32.totalorder %s72, %s73
      %p84 = scmp.eq.s32.totalorder %s22, 0
      %p85 = por %p83, %p84
      %p86 = scmp.ne.s32.totalorder %s72, %s73
      %p87 = scmp.eq.s32.totalorder %s23, 1
      %p88 = por %p86, %p87
      %p90 = scmp.ne.s32.totalorder %s73, %s89
      %p91 = scmp.eq.s32.totalorder %s23, 0
      %p92 = por %p90, %p91
      %s93 = ssub.s32 %s24, %s36
      %p94 = scmp.eq.s32.totalorder %s93, 0
      %s96 = sadd.s32 %s95, 1
      %s97 = scalar_select %p94, %s95, %s96
      %p100 = pneg %p94
      %p101 = scmp.eq.s32.totalorder %s17, 1
      %p102 = por %p100, %p101
      %p103 = scmp.ne.s32.totalorder %s95, %s98
      %p104 = scmp.eq.s32.totalorder %s17, 0
      %p105 = por %p103, %p104
      %p106 = scmp.ne.s32.totalorder %s95, %s98
      %p107 = scmp.eq.s32.totalorder %s22, 1
      %p108 = por %p106, %p107
      %p109 = scmp.ne.s32.totalorder %s98, %s99
      %p110 = scmp.eq.s32.totalorder %s22, 0
      %p111 = por %p109, %p110
      %p112 = scmp.ne.s32.totalorder %s98, %s99
      %p113 = scmp.eq.s32.totalorder %s23, 1
      %p114 = por %p112, %p113
      %p116 = scmp.ne.s32.totalorder %s99, %s115
      %p117 = scmp.eq.s32.totalorder %s23, 0
      %p118 = por %p116, %p117
      %p119 = scmp.le.s32.totalorder 1, %s17
      %p120 = scmp.lt.s32.totalorder %s17, 3
      %p121 = pnand %p119, %p120
      %p122 = pneg %p121
      // Predicated region
      $region9: #{tpu_custom_call.1} parent=5 // pred_check
        _
      $region10: #{tpu_custom_call.1} parent=5 // pred_check_branch
        %124 = sbr.rel (%p121) target = $region12
      $region11: #{tpu_custom_call.1} parent=5 // pred_region
        %s125 = ssub.s32 %s17, 1
      $region12: #{tpu_custom_call.1} parent=5 // pred_fallthru
        _
      %p126 = scmp.lt.s32.totalorder %s17, 2
      // Predicated region
      $region13: #{tpu_custom_call.1} parent=5 // pred_check
        %p127 = pneg %p126
      $region14: #{tpu_custom_call.1} parent=5 // pred_check_branch
        %129 = sbr.rel (%p127) target = $region16
      $region15: #{tpu_custom_call.1} parent=5 // pred_region
        // Predicated region
        $region17: #{tpu_custom_call.1} parent=15 // pred_check
          %p130 = pneg %p51
        $region18: #{tpu_custom_call.1} parent=15 // pred_check_branch
          %132 = sbr.rel (%p130) target = $region20
        $region19: #{tpu_custom_call.1} parent=15 // pred_region
          %s133 = sand.u32 %s41, 1
          %s134 = scalar_lea.sflag [#allocation4], %s133
          %s135 = sand.u32 %s41, 1
          %s136 = smul.addr %s135, 2
          %s137 = scalar_lea.vmem [#allocation3], %s136
          %s139 = ssub.s32 32, 32
          %140 = vsyncadd %s134, %s139
          %s141 = smul.addr %s25, 2
          %s142 = smul.addr %s24, 8
          %s143 = sadd.s32 %s141, %s142
          %s144 = smul.addr %s143, 16
          %s145 = scalar_lea.hbm %s0, %s144
          %s147 = sshll.u32 %s137, 4
          %s148 = int_to_ptr.vmem [resolvable:$true] %s147
          %150 = dma.hbm_to_vmem [thread:$0]  %s145, 32, %s148, %s134
        $region20: #{tpu_custom_call.1} parent=15 // pred_fallthru
          _
        // Predicated region
        $region21: #{tpu_custom_call.1} parent=15 // pred_check
          %p151 = pneg %p79
        $region22: #{tpu_custom_call.1} parent=15 // pred_check_branch
          %153 = sbr.rel (%p151) target = $region24
        $region23: #{tpu_custom_call.1} parent=15 // pred_region
          %s154 = sand.u32 %s69, 1
          %s155 = scalar_lea.sflag [#allocation7], %s154
          %s156 = sand.u32 %s69, 1
          %s157 = smul.addr %s156, 2
          %s158 = scalar_lea.vmem [#allocation6], %s157
          %s160 = ssub.s32 32, 32
          %161 = vsyncadd %s155, %s160
          %s162 = smul.addr %s25, 2
          %s163 = smul.addr %s24, 8
          %s164 = sadd.s32 %s162, %s163
          %s165 = smul.addr %s164, 16
          %s166 = scalar_lea.hbm %s1, %s165
          %s168 = sshll.u32 %s158, 4
          %s169 = int_to_ptr.vmem [resolvable:$true] %s168
          %171 = dma.hbm_to_vmem [thread:$0]  %s166, 32, %s169, %s155
        $region24: #{tpu_custom_call.1} parent=15 // pred_fallthru
          _
      $region16: #{tpu_custom_call.1} parent=5 // pred_fallthru
        _
      %p172 = scmp.le.s32.totalorder 1, %s17
      %p173 = scmp.lt.s32.totalorder %s17, 3
      %p174 = pnand %p172, %p173
      %p175 = pneg %p174
      // Predicated region
      $region25: #{tpu_custom_call.1} parent=5 // pred_check
        _
      $region26: #{tpu_custom_call.1} parent=5 // pred_check_branch
        %177 = sbr.rel (%p174) target = $region28
      $region27: #{tpu_custom_call.1} parent=5 // pred_region
        %s178 = ssub.s32 %s17, 1
        %s179 = sand.u32 %s44, 1
        %s180 = scalar_lea.sflag [#allocation4], %s179
        %s181 = sand.u32 %s44, 1
        %s182 = smul.addr %s181, 2
        %s183 = scalar_lea.vmem [#allocation3], %s182
        // Predicated region
        $region29: #{tpu_custom_call.1} parent=27 // pred_check
          %p184 = pneg %p57
        $region30: #{tpu_custom_call.1} parent=27 // pred_check_branch
          %186 = sbr.rel (%p184) target = $region32
        $region31: #{tpu_custom_call.1} parent=27 // pred_region
          %187 = dma.done %s180, 32
        $region32: #{tpu_custom_call.1} parent=27 // pred_fallthru
          _
        %s188 = sand.u32 %s72, 1
        %s189 = scalar_lea.sflag [#allocation7], %s188
        %s190 = sand.u32 %s72, 1
        %s191 = smul.addr %s190, 2
        %s192 = scalar_lea.vmem [#allocation6], %s191
        // Predicated region
        $region33: #{tpu_custom_call.1} parent=27 // pred_check
          %p193 = pneg %p85
        $region34: #{tpu_custom_call.1} parent=27 // pred_check_branch
          %195 = sbr.rel (%p193) target = $region36
        $region35: #{tpu_custom_call.1} parent=27 // pred_region
          %196 = dma.done %s189, 32
        $region36: #{tpu_custom_call.1} parent=27 // pred_fallthru
          _
        %s197 = sand.u32 %s44, 1
        %s198 = scalar_lea.sflag [#allocation4], %s197
        %s199 = sand.u32 %s44, 1
        %s200 = smul.addr %s199, 2
        %s201 = scalar_lea.vmem [#allocation3], %s200
        %p202 = pneg %p57
        %p203 = pneg %p54
        %s204 = sand.u32 %s72, 1
        %s205 = scalar_lea.sflag [#allocation7], %s204
        %s206 = sand.u32 %s72, 1
        %s207 = smul.addr %s206, 2
        %s208 = scalar_lea.vmem [#allocation6], %s207
        %p209 = pneg %p85
        %p210 = pneg %p82
        %p211 = pneg %p111
        %p212 = pneg %p108
        %s213 = sand.u32 %s98, 1
        %s214 = scalar_lea.sflag [#allocation5], %s213
        %s215 = sand.u32 %s98, 1
        %s216 = smul.addr %s215, 4
        %s217 = scalar_lea.vmem [#allocation8], %s216
        %p218 = scmp.eq.s32.totalorder %s27, 0
        // Predicated region
        $region37: #{tpu_custom_call.1} parent=27 // pred_check
          %p219 = pneg %p218
        $region38: #{tpu_custom_call.1} parent=27 // pred_check_branch
          %221 = sbr.rel (%p219) target = $region40
        $region39: #{tpu_custom_call.1} parent=27 // pred_region
          %222 = vst [vmem:[#allocation2] sm:$0xf] 0.0
        $region40: #{tpu_custom_call.1} parent=27 // pred_fallthru
          _
        %v223 = vld [vmem:[%s183] sm:$0x3]
        %v224 = vld [vmem:[%s192] sm:$0x3]
        %v225 = vld [vmem:[#allocation2] ss:$2 sm:$0x3]
        %v226 = vmul.f32 %v223, %v224
        %v227 = vadd.f32 %v226, 0.0
        %v228 = vadd.f32 %v225, %v227
        %v229 = vlaneseq
        %vm230 = vcmp.ge.s32.totalorder %v229, 0
        %vm231 = vcmp.lt.s32.totalorder %v229, 256
        %vm232 = vmand %vm230, %vm231
        %233 = vst.msk [vmem:[#allocation2] ss:$2 sm:$0x3] %vm232, %v228
        %s234 = scalar_lea.vmem [#allocation2], 1
        %v235 = vld [vmem:[%s234] ss:$2 sm:$0x3]
        %v236 = vadd.f32 %v223, %v224
        %v237 = vadd.f32 %v236, 0.0
        %v238 = vadd.f32 %v235, %v237
        %239 = vst.msk [vmem:[%s234] ss:$2 sm:$0x3] %vm232, %v238
        // Predicated region
        $region41: #{tpu_custom_call.1} parent=27 // pred_check
          %p240 = pneg %p218
        $region42: #{tpu_custom_call.1} parent=27 // pred_check_branch
          %242 = sbr.rel (%p240) target = $region44
        $region43: #{tpu_custom_call.1} parent=27 // pred_region
          %v243 = vld [vmem:[#allocation2] sm:$0xf]
          %244 = vst [vmem:[%s217] sm:$0xf] %v243
        $region44: #{tpu_custom_call.1} parent=27 // pred_fallthru
          _
        %s245 = sand.u32 %s98, 1
        %s246 = scalar_lea.sflag [#allocation5], %s245
        %s247 = sand.u32 %s98, 1
        %s248 = smul.addr %s247, 4
        %s249 = scalar_lea.vmem [#allocation8], %s248
        // Predicated region
        $region45: #{tpu_custom_call.1} parent=27 // pred_check
          %p250 = pneg %p108
        $region46: #{tpu_custom_call.1} parent=27 // pred_check_branch
          %252 = sbr.rel (%p250) target = $region48
        $region47: #{tpu_custom_call.1} parent=27 // pred_region
          %s254 = ssub.s32 64, 64
          %255 = vsyncadd %s246, %s254
          %s256 = smul.addr %s26, 2
          %s257 = smul.addr %s256, 32
          %s258 = scalar_lea.hbm %s2, %s257
          %s260 = sshll.u32 %s249, 4
          %s261 = int_to_ptr.vmem [resolvable:$true] %s260
          %263 = dma.vmem_to_hbm [thread:$0]  %s261, 64, %s258, %s246
        $region48: #{tpu_custom_call.1} parent=27 // pred_fallthru
          _
      $region28: #{tpu_custom_call.1} parent=5 // pred_fallthru
        _
      %p264 = scmp.le.s32.totalorder 2, %s17
      // Predicated region
      $region49: #{tpu_custom_call.1} parent=5 // pred_check
        %p265 = pneg %p264
      $region50: #{tpu_custom_call.1} parent=5 // pred_check_branch
        %267 = sbr.rel (%p265) target = $region52
      $region51: #{tpu_custom_call.1} parent=5 // pred_region
        %s268 = ssub.s32 %s17, 2
        // Predicated region
        $region53: #{tpu_custom_call.1} parent=51 // pred_check
          %p269 = pneg %p114
        $region54: #{tpu_custom_call.1} parent=51 // pred_check_branch
          %271 = sbr.rel (%p269) target = $region56
        $region55: #{tpu_custom_call.1} parent=51 // pred_region
          %s272 = sand.u32 %s99, 1
          %s273 = scalar_lea.sflag [#allocation5], %s272
          %s274 = sand.u32 %s99, 1
          %s275 = smul.addr %s274, 4
          %s276 = scalar_lea.vmem [#allocation8], %s275
          %277 = dma.done %s273, 64
        $region56: #{tpu_custom_call.1} parent=51 // pred_fallthru
          _
      $region52: #{tpu_custom_call.1} parent=5 // pred_fallthru
        _
    $region6: #{tpu_custom_call.1} parent=1 // loop_footer
      %s21 = sadd.s32 1, %s17
    $region7: #{tpu_custom_call.1} parent=1 // loop_footer_branch
      %16 = sbr.rel target = $region3
    $region8: #{tpu_custom_call.1} parent=1 // loop_exit
      _
    %278 = vsyncpa [#allocation4], 1
    %s279 = scalar_lea.sflag [#allocation4], 1
    %280 = vsyncpa %s279, 1
    %281 = vsyncpa [#allocation7], 1
    %s282 = scalar_lea.sflag [#allocation7], 1
    %283 = vsyncpa %s282, 1
    %284 = vsyncpa [#allocation5], 1
    %s285 = scalar_lea.sflag [#allocation5], 1
    %286 = vsyncpa %s285, 1

</llo_original>
